<compile_context>
chip_gen: v5e
topology: v5e:2x2
jax: 0.10.0
libtpu: 0.0.40
codegen_flags: <defaults>
</compile_context>

<pallas_src>
import functools

import jax
import jax.numpy as jnp
from jax.experimental import pallas as pl
from jax.experimental.pallas import tpu as pltpu


def _expert_stack_kernel(*refs, num_layers, compute_dtype):
    """Fused [Linear -> bias -> ReLU] * num_layers on one M-tile.

    refs layout: (x_ref, w0_ref, b0_ref, w1_ref, b1_ref, ..., o_ref)
      x_ref : (tm, K0)        in compute_dtype
      wL_ref: (K_L, N_L)      in compute_dtype
      bL_ref: (1,  N_L)       f32
      o_ref : (tm, N_last)
    Intermediates never leave on-chip memory.
    """
    x_ref = refs[0]
    o_ref = refs[-1]

    h = x_ref[...]
    for layer in range(num_layers):
        w_ref = refs[1 + 2 * layer]
        b_ref = refs[2 + 2 * layer]
        # MXU matmul with f32 accumulation; bias add + ReLU on the f32
        # accumulator (VPU), done once per output tile (no K loop here).
        acc = jnp.dot(h.astype(compute_dtype), w_ref[...],
                      preferred_element_type=jnp.float32)
        acc = acc + b_ref[...]          # broadcast (1, N) over rows
        h = jnp.maximum(acc, 0.0)       # ReLU in f32
    o_ref[...] = h.astype(o_ref.dtype)


def expert_forward(x, params, *, compute_dtype=jnp.float32, tm=None):
    """Fused Expert forward: y = relu(...relu(x @ W0 + b0)... @ WL + bL).

    x:      (M, K0) float32
    params: list of (w, b) with w: (K_i, N_i), b: (N_i,)
    compute_dtype: dtype fed to the MXU (f32 or bf16); accumulation is f32.
    """
    M, K0 = x.shape
    num_layers = len(params)
    assert num_layers >= 1
    N_last = params[-1][0].shape[1]
    out_dtype = x.dtype

    # Cap & align the M tile: full MXU row occupancy, bounded VMEM per step,
    # and a >1-program "parallel" grid axis at larger batch.
    if tm is None:
        tm = min(M, 256)
        if tm >= 8:
            tm -= tm % 8  # keep (8,128) sublane divisibility for edge-free tiles
    grid = (pl.cdiv(M, tm),)

    # TODO(synk): for large hidden dims (K*N*4 approaching the scoped VMEM
    # limit, esp. v7x's 64 MiB), add K/N grid tiling with an f32 accumulator
    # scratch; the shapes used by this module are tiny so full (K, N) weight
    # blocks are resident.
    x_c = x.astype(compute_dtype)
    flat_inputs = [x_c]
    in_specs = [pl.BlockSpec((tm, K0), lambda i: (i, 0))]

    flops = 0
    bytes_accessed = (x_c.size * x_c.dtype.itemsize
                      + M * N_last * jnp.dtype(out_dtype).itemsize)
    for (w, b) in params:
        K, N = w.shape
        w_c = w.astype(compute_dtype)
        b2 = b.reshape(1, N).astype(jnp.float32)
        flat_inputs.extend([w_c, b2])
        in_specs.extend([
            pl.BlockSpec((K, N), lambda i: (0, 0)),
            pl.BlockSpec((1, N), lambda i: (0, 0)),
        ])
        flops += 2 * M * K * N
        bytes_accessed += w_c.size * w_c.dtype.itemsize + b2.size * 4

    kernel = functools.partial(_expert_stack_kernel,
                               num_layers=num_layers,
                               compute_dtype=compute_dtype)
    return pl.pallas_call(
        kernel,
        out_shape=jax.ShapeDtypeStruct((M, N_last), out_dtype),
        grid_spec=pl.GridSpec(
            grid=grid,
            in_specs=in_specs,
            out_specs=pl.BlockSpec((tm, N_last), lambda i: (i, 0)),
        ),
        compiler_params=pltpu.CompilerParams(
            dimension_semantics=("parallel",),
        ),
        cost_estimate=pl.CostEstimate(
            flops=flops, transcendentals=0, bytes_accessed=bytes_accessed),
    )(*flat_inputs)


class ExpertPallas:
    """JAX/Pallas equivalent of the torch Expert module (inference forward)."""

    def __init__(self, input_dim, layers, is_bn=False, dropout_rate=None, key=None):
        # TODO(synk): is_bn=True uses BatchNorm1d(1) (single-channel BN) which
        # is only well-defined for feature dim == 1 in torch; not implemented.
        assert not is_bn, "BatchNorm path not implemented"
        # Dropout is a no-op at inference time, so dropout_rate is ignored.
        self.input_dim = input_dim
        self.layers = layers
        if key is None:
            key = jax.random.PRNGKey(0)
        self.params = []
        emb_dim = input_dim
        for h in layers:
            key, wk, bk = jax.random.split(key, 3)
            # deterministic, torch-Linear-like uniform init
            bound = 1.0 / jnp.sqrt(emb_dim)
            w = jax.random.uniform(wk, (emb_dim, h), jnp.float32, -bound, bound)
            b = jax.random.uniform(bk, (h,), jnp.float32, -bound, bound)
            self.params.append((w, b))
            emb_dim = h

    def __call__(self, x, *, compute_dtype=jnp.float32):
        # Entire layer stack fused into a single pallas_call.
        return expert_forward(x, self.params, compute_dtype=compute_dtype)


def _reference_forward(expert, x):
    out = x
    for (w, b) in expert.params:
        out = jnp.maximum(out @ w + b, 0.0)
    return out


if __name__ == "__main__":
    key = jax.random.PRNGKey(0)
    batch, input_dim = 8, 32
    hidden_layers = [64, 32]

    xkey, pkey = jax.random.split(key)
    x = jax.random.normal(xkey, (batch, input_dim), dtype=jnp.float32)

    expert = ExpertPallas(input_dim, hidden_layers, is_bn=False,
                          dropout_rate=None, key=pkey)

    # f32 path (exact vs. reference).
    y = expert(x)
    y = jax.block_until_ready(y)
    y_ref = _reference_forward(expert, x)
    assert y.shape == (batch, hidden_layers[-1])
    assert jnp.allclose(y, y_ref, atol=1e-5, rtol=1e-5)

    # bf16-fed MXU path (f32 accumulation) — looser tolerance.
    y_bf16 = jax.block_until_ready(expert(x, compute_dtype=jnp.bfloat16))
    assert y_bf16.shape == (batch, hidden_layers[-1])
    assert bool(jnp.all(jnp.isfinite(y_bf16)))
    assert jnp.allclose(y_bf16, y_ref, atol=1e-1, rtol=1e-1)

    print("KERNEL_OK")
</pallas_src>

<mosaic_0001>
module attributes {stable_mosaic.version = 11 : i64} {
  func.func @_expert_stack_kernel(%arg0: i32, %arg1: memref<8x32xf32, #tpu.memory_space<vmem>>, %arg2: memref<32x64xf32, #tpu.memory_space<vmem>>, %arg3: memref<1x64xf32, #tpu.memory_space<vmem>>, %arg4: memref<64x32xf32, #tpu.memory_space<vmem>>, %arg5: memref<1x32xf32, #tpu.memory_space<vmem>>, %arg6: memref<8x32xf32, #tpu.memory_space<vmem>>) attributes {dimension_semantics = [#tpu.dimension_semantics<parallel>], iteration_bounds = array<i64: 1>, scalar_prefetch = 0 : i64, scratch_operands = 0 : i64, tpu.core_type = #tpu.core_type<tc>, window_params = [{transform_indices = @transform_0, window_bounds = array<i64: 8, 32>}, {pipeline_mode = #tpu.pipeline_mode<synchronous>, transform_indices = @transform_1, window_bounds = array<i64: 32, 64>}, {pipeline_mode = #tpu.pipeline_mode<synchronous>, transform_indices = @transform_2, window_bounds = array<i64: 1, 64>}, {pipeline_mode = #tpu.pipeline_mode<synchronous>, transform_indices = @transform_3, window_bounds = array<i64: 64, 32>}, {pipeline_mode = #tpu.pipeline_mode<synchronous>, transform_indices = @transform_4, window_bounds = array<i64: 1, 32>}, {transform_indices = @transform_5, window_bounds = array<i64: 8, 32>}]} {
    %c0 = arith.constant 0 : index
    %c0_0 = arith.constant 0 : index
    %0 = vector.load %arg1[%c0, %c0_0] : memref<8x32xf32, #tpu.memory_space<vmem>>, vector<8x32xf32>
    %c0_1 = arith.constant 0 : index
    %c0_2 = arith.constant 0 : index
    %1 = vector.load %arg2[%c0_1, %c0_2] : memref<32x64xf32, #tpu.memory_space<vmem>>, vector<32x64xf32>
    %cst = arith.constant dense<0.000000e+00> : vector<8x64xf32>
    %2 = tpu.matmul %0, %1, %cst {dimension_numbers = #tpu.dot_dimension_numbers<[1], [0], [0], [1], [0, 0, 1, 1], [], []>} : vector<8x32xf32>, vector<32x64xf32>, vector<8x64xf32> -> vector<8x64xf32>
    %c0_3 = arith.constant 0 : index
    %c0_4 = arith.constant 0 : index
    %3 = vector.load %arg3[%c0_3, %c0_4] : memref<1x64xf32, #tpu.memory_space<vmem>>, vector<1x64xf32>
    %4 = vector.broadcast %3 : vector<1x64xf32> to vector<8x64xf32>
    %5 = arith.addf %2, %4 : vector<8x64xf32>
    %cst_5 = arith.constant 0.000000e+00 : f32
    %6 = vector.broadcast %cst_5 : f32 to vector<8x64xf32>
    %7 = arith.maximumf %5, %6 : vector<8x64xf32>
    %c0_6 = arith.constant 0 : index
    %c0_7 = arith.constant 0 : index
    %8 = vector.load %arg4[%c0_6, %c0_7] : memref<64x32xf32, #tpu.memory_space<vmem>>, vector<64x32xf32>
    %cst_8 = arith.constant dense<0.000000e+00> : vector<8x32xf32>
    %9 = tpu.matmul %7, %8, %cst_8 {dimension_numbers = #tpu.dot_dimension_numbers<[1], [0], [0], [1], [0, 0, 1, 1], [], []>} : vector<8x64xf32>, vector<64x32xf32>, vector<8x32xf32> -> vector<8x32xf32>
    %c0_9 = arith.constant 0 : index
    %c0_10 = arith.constant 0 : index
    %10 = vector.load %arg5[%c0_9, %c0_10] : memref<1x32xf32, #tpu.memory_space<vmem>>, vector<1x32xf32>
    %11 = vector.broadcast %10 : vector<1x32xf32> to vector<8x32xf32>
    %12 = arith.addf %9, %11 : vector<8x32xf32>
    %cst_11 = arith.constant 0.000000e+00 : f32
    %13 = vector.broadcast %cst_11 : f32 to vector<8x32xf32>
    %14 = arith.maximumf %12, %13 : vector<8x32xf32>
    %c0_12 = arith.constant 0 : index
    %c0_13 = arith.constant 0 : index
    %15 = vector.load %arg6[%c0_12, %c0_13] : memref<8x32xf32, #tpu.memory_space<vmem>>, vector<8x32xf32>
    tpu.vector_store %arg6[%c0_12, %c0_13], %14 {strides = array<i32>} : memref<8x32xf32, #tpu.memory_space<vmem>>, vector<8x32xf32>,
    return
  }
  func.func @transform_0(%arg0: i32) -> (i32, i32) {
    %c0_i32 = arith.constant 0 : i32
    %c0_i32_0 = arith.constant 0 : i32
    return %arg0, %c0_i32 : i32, i32
  }
  func.func @transform_1(%arg0: i32) -> (i32, i32) {
    %c0_i32 = arith.constant 0 : i32
    %c0_i32_0 = arith.constant 0 : i32
    %c0_i32_1 = arith.constant 0 : i32
    return %c0_i32, %c0_i32_0 : i32, i32
  }
  func.func @transform_2(%arg0: i32) -> (i32, i32) {
    %c0_i32 = arith.constant 0 : i32
    %c0_i32_0 = arith.constant 0 : i32
    %c0_i32_1 = arith.constant 0 : i32
    return %c0_i32, %c0_i32_0 : i32, i32
  }
  func.func @transform_3(%arg0: i32) -> (i32, i32) {
    %c0_i32 = arith.constant 0 : i32
    %c0_i32_0 = arith.constant 0 : i32
    %c0_i32_1 = arith.constant 0 : i32
    return %c0_i32, %c0_i32_0 : i32, i32
  }
  func.func @transform_4(%arg0: i32) -> (i32, i32) {
    %c0_i32 = arith.constant 0 : i32
    %c0_i32_0 = arith.constant 0 : i32
    %c0_i32_1 = arith.constant 0 : i32
    return %c0_i32, %c0_i32_0 : i32, i32
  }
  func.func @transform_5(%arg0: i32) -> (i32, i32) {
    %c0_i32 = arith.constant 0 : i32
    %c0_i32_0 = arith.constant 0 : i32
    return %arg0, %c0_i32 : i32, i32
  }
}

</mosaic_0001>

<llo_original>
// kernel: tpu_custom_call.1
$region0: #{tpu_custom_call.1}
  #allocation0 [shape = 'u32[]', space=smem, size = 0x4, offset = 0x4, fixed_abs, tag = 'smem constant byte address 0x4 - core index']
  #allocation1 [shape = 'u32[72,128]{1,0:T(1,128)}', space=vmem, size = 0x9000, scoped, tag = 'internal scratch']
  %s0 = inlined_call_operand.vmem [shape: f32[8,32], index: 0, kind: input, shape index: {}]
  %s1 = inlined_call_operand.vmem [shape: f32[32,64], index: 1, kind: input, shape index: {}]
  %s2 = inlined_call_operand.vmem [shape: f32[1,64], index: 2, kind: input, shape index: {}]
  %s3 = inlined_call_operand.vmem [shape: f32[64,32], index: 3, kind: input, shape index: {}]
  %s4 = inlined_call_operand.vmem [shape: f32[1,32], index: 4, kind: input, shape index: {}]
  %s5 = inlined_call_operand.hbm [shape: f32[8,32], index: 5, kind: output, shape index: {}]
  %s6 = sld [smem:[#allocation0]]
  $region30: #{tpu_custom_call.1} parent=0
    _
  %s8 = ssub.s32 1, %s6
  %s9 = scalar_select 0, %s8, %s6
  $region1: #{tpu_custom_call.1} parent=0
    #allocation2 [shape = 'u8[4096]{0}', space=vmem, size = 0x1000, scoped, tag = 'output window, operand 0, single buffered']
    #allocation3 [shape = 's32[1]{0}', space=sflag, size = 0x4, scoped, tag = 'scoped memory for tpu_custom_call.1']
    %10 = vsyncpa [#allocation3], 0
    // Predicated region
    $region2: #{tpu_custom_call.1} parent=1 // pred_check
      _
    $region3: #{tpu_custom_call.1} parent=1 // pred_check_branch
      %12 = sbr.rel (0) target = $region5
    $region4: #{tpu_custom_call.1} parent=1 // pred_region
      _
    $region5: #{tpu_custom_call.1} parent=1 // pred_fallthru
      _
    // Predicated region
    $region6: #{tpu_custom_call.1} parent=1 // pred_check
      _
    $region7: #{tpu_custom_call.1} parent=1 // pred_check_branch
      %14 = sbr.rel (0) target = $region9
    $region8: #{tpu_custom_call.1} parent=1 // pred_region
      _
    $region9: #{tpu_custom_call.1} parent=1 // pred_fallthru
      _
    // Predicated region
    $region10: #{tpu_custom_call.1} parent=1 // pred_check
      _
    $region11: #{tpu_custom_call.1} parent=1 // pred_check_branch
      %16 = sbr.rel (0) target = $region13
    $region12: #{tpu_custom_call.1} parent=1 // pred_region
      _
    $region13: #{tpu_custom_call.1} parent=1 // pred_fallthru
      _
    // Predicated region
    $region14: #{tpu_custom_call.1} parent=1 // pred_check
      _
    $region15: #{tpu_custom_call.1} parent=1 // pred_check_branch
      %18 = sbr.rel (0) target = $region17
    $region16: #{tpu_custom_call.1} parent=1 // pred_region
      _
    $region17: #{tpu_custom_call.1} parent=1 // pred_fallthru
      _
    // Predicated region
    $region18: #{tpu_custom_call.1} parent=1 // pred_check
      _
    $region19: #{tpu_custom_call.1} parent=1 // pred_check_branch
      %20 = sbr.rel (0) target = $region21
    $region20: #{tpu_custom_call.1} parent=1 // pred_region
      _
    $region21: #{tpu_custom_call.1} parent=1 // pred_fallthru
      _
    %v21 = vld [vmem:[%s0] sm:$0xff]
    %v22 = vld [vmem:[%s1] sm:$0xff]
    %v23 = vld [vmem:[%s1 + $0x8] sm:$0xff]
    %v24 = vld [vmem:[%s1 + $0x10] sm:$0xff]
    %v25 = vld [vmem:[%s1 + $0x18] sm:$0xff]
    %v26 = vld [vmem:[%s2] sm:$0x1]
    %v28 = vperm.slane %v26, 0
    %vm30 = vcmask 261120
    %v32 = vsel %vm30, %v21, 0
    %34 = vmatpush.msra.mxu0 0.0
    %35 = vmatpush.msra.mxu0 0.0
    %36 = vmatpush.msra.mxu0 0.0
    %37 = vmatpush.msra.mxu0 0.0
    %38 = vmatpush.msra.mxu0 0.0
    %39 = vmatpush.msra.mxu0 0.0
    %40 = vmatpush.msra.mxu0 0.0
    %41 = vmatpush.msra.mxu0 0.0
    %42 = vmatpush.msra.mxu0 0.0
    %43 = vmatpush.msra.mxu0 0.0
    %44 = vmatpush.msra.mxu0 0.0
    %45 = vmatpush.msra.mxu0 0.0
    %46 = vmatpush.msra.mxu0 %v25
    %47 = vmatpush.msra.mxu0 %v24
    %48 = vmatpush.msra.mxu0 %v23
    %49 = vmatpush.msra.mxu0 %v22
    %50 = vmatmul.f32.gmra.mxu0 %v32
    %v51 = vpop.f32.mrf.mxu0
    %v52 = vadd.f32 %v28, %v51
    %53 = vdwg.mxu0
    %v54 = vmax.f32 %v52, 0.0
    %v55 = vld [vmem:[%s3] sm:$0xff]
    %v56 = vld [vmem:[%s3 + $0x8] sm:$0xff]
    %v57 = vld [vmem:[%s3 + $0x10] sm:$0xff]
    %v58 = vld [vmem:[%s3 + $0x18] sm:$0xff]
    %v59 = vld [vmem:[%s3 + $0x20] sm:$0xff]
    %v60 = vld [vmem:[%s3 + $0x28] sm:$0xff]
    %v61 = vld [vmem:[%s3 + $0x30] sm:$0xff]
    %v62 = vld [vmem:[%s3 + $0x38] sm:$0xff]
    %v63 = vld [vmem:[%s4] sm:$0x1]
    %v65 = vperm.slane %v63, 0
    %vm67 = vcmask 523264
    %v69 = vsel %vm67, %v54, 0
    %71 = vmatpush.msra.mxu0 0.0
    %72 = vmatpush.msra.mxu0 0.0
    %73 = vmatpush.msra.mxu0 0.0
    %74 = vmatpush.msra.mxu0 0.0
    %75 = vmatpush.msra.mxu0 0.0
    %76 = vmatpush.msra.mxu0 0.0
    %77 = vmatpush.msra.mxu0 0.0
    %78 = vmatpush.msra.mxu0 0.0
    %79 = vmatpush.msra.mxu0 %v62
    %80 = vmatpush.msra.mxu0 %v61
    %81 = vmatpush.msra.mxu0 %v60
    %82 = vmatpush.msra.mxu0 %v59
    %83 = vmatpush.msra.mxu0 %v58
    %84 = vmatpush.msra.mxu0 %v57
    %85 = vmatpush.msra.mxu0 %v56
    %86 = vmatpush.msra.mxu0 %v55
    %87 = vmatmul.f32.gmra.mxu0 %v69
    %v88 = vpop.f32.mrf.mxu0
    %v89 = vadd.f32 %v65, %v88
    %90 = vdwg.mxu0
    %v91 = vmax.f32 %v89, 0.0
    %92 = vst.msk [vmem:[#allocation2] sm:$0xff] %vm30, %v91
    // Predicated region
    $region22: #{tpu_custom_call.1} parent=1 // pred_check
      _
    $region23: #{tpu_custom_call.1} parent=1 // pred_check_branch
      %94 = sbr.rel (0) target = $region25
    $region24: #{tpu_custom_call.1} parent=1 // pred_region
      %96 = vsyncadd [#allocation3], 0
      %s98 = sshll.u32 [#allocation2], 4
      %s99 = int_to_ptr.vmem [resolvable:$true] %s98
      %s100 = sshll.u32 %s5, 4
      %s101 = int_to_ptr.hbm [resolvable:$true] %s100
      %103 = dma.vmem_to_hbm [thread:$0]  %s99, 128, %s101, [#allocation3]
    $region25: #{tpu_custom_call.1} parent=1 // pred_fallthru
      _
    // Predicated region
    $region26: #{tpu_custom_call.1} parent=1 // pred_check
      _
    $region27: #{tpu_custom_call.1} parent=1 // pred_check_branch
      %105 = sbr.rel (0) target = $region29
    $region28: #{tpu_custom_call.1} parent=1 // pred_region
      %107 = dma.done [#allocation3], 128
    $region29: #{tpu_custom_call.1} parent=1 // pred_fallthru
      _
    %108 = vsyncpa [#allocation3], 1

</llo_original>
